<compile_context>
chip_gen: v5e
topology: v5e:2x2
jax: 0.10.0
libtpu: 0.0.40
codegen_flags: <defaults>
</compile_context>

<pallas_src>
import numpy as np
import jax
import jax.numpy as jnp
from jax import lax
from jax.experimental import pallas as pl
from jax.experimental.pallas import tpu as pltpu


def _round_up(x, m):
    return ((x + m - 1) // m) * m


def _gru_obs_kernel(h_ref, x_ref, w_ref, b_ref, iobs_ref, o_ref):
    """One batch tile of the GRU-ODE observation update.

    h_ref    : VMEM f32 [TB, Hp]        joint hidden state tile
    x_ref    : VMEM f32 [TB, Dp]        mgn_h_tilde tile
    w_ref    : VMEM f32 [Dp, 2*Hp]      fused [W_z | W_h] (resident, single-buffered)
    b_ref    : VMEM f32 [1, 2*Hp]       fused [b_z | b_h] (resident)
    iobs_ref : VMEM i32 [1, n_obs_p]    observed row indices, padded with -1
    o_ref    : VMEM f32 [TB, Hp]
    """
    h = h_ref[...]
    x = x_ref[...]
    TB, Hp = h.shape

    # Single fused matmul for both gates on the MXU, f32 accumulation.
    zh = jnp.dot(x, w_ref[...], preferred_element_type=jnp.float32) + b_ref[...]
    z = jax.nn.sigmoid(zh[:, :Hp])
    h_tilde = jnp.tanh(zh[:, Hp:])
    h_new = h_tilde + z * (h - h_tilde)

    # Vectorized observation mask: row r is "observed" iff its global index
    # appears in i_obs.  Broadcast compare (VPU) + lane max-reduce (XLU slot),
    # no scalar loop.
    row0 = pl.program_id(0) * TB
    n_obs_p = iobs_ref.shape[1]
    row_ids = lax.broadcasted_iota(jnp.int32, (TB, n_obs_p), 0) + row0
    eq = (row_ids == iobs_ref[...]).astype(jnp.float32)        # (TB, n_obs_p)
    mask = jnp.max(eq, axis=-1, keepdims=True)                 # (TB, 1)

    # temp[i_obs] = h_new[i_obs]; all other rows keep joint_h.
    o_ref[...] = jnp.where(mask > 0.0, h_new, h)


def pack_joint_gru_params(W_z, W_h, b_z, b_h):
    """One-time parameter packing (hoisted out of the per-solver-step path).

    Returns (w_fused, b_fused): [Dp, 2*Hp] and [1, 2*Hp], lane-padded to 128.
    """
    D, H = W_z.shape
    assert W_h.shape == (H, H) and D == H, \
        "torch.mm(mgn_h_tilde, W_h) requires input_size * n_dim == joint_hidden_size"
    Hp = _round_up(H, 128)
    Dp = _round_up(D, 128)

    def pad2(a, r, c):
        a = a.astype(jnp.float32)
        if a.shape == (r, c):
            return a
        return jnp.pad(a, ((0, r - a.shape[0]), (0, c - a.shape[1])))

    w_fused = jnp.concatenate([pad2(W_z, Dp, Hp), pad2(W_h, Dp, Hp)], axis=1)
    b_fused = jnp.concatenate(
        [jnp.pad(b_z.astype(jnp.float32), (0, Hp - H)),
         jnp.pad(b_h.astype(jnp.float32), (0, Hp - H))]).reshape(1, 2 * Hp)
    return w_fused, b_fused


def joint_gru_ode_obs_cell(joint_h, mgn_h_tilde, i_obs, w_fused, b_fused,
                           *, block_rows=1024):
    """Pallas implementation of joint_GRUODEObsCell.forward."""
    B, H = joint_h.shape
    D = mgn_h_tilde.shape[1]
    Dp, two_Hp = w_fused.shape
    Hp = two_Hp // 2

    n_obs = int(i_obs.shape[0])
    if n_obs == 0:                       # nothing observed -> unchanged state
        return joint_h

    # --- adaptive batch tiling -------------------------------------------------
    n_tiles = max(1, pl.cdiv(B, block_rows))
    if n_tiles == 1 and B >= 256:
        n_tiles = 2                      # let v7x megacore shard the batch axis
    TB = _round_up(pl.cdiv(B, n_tiles), 8)
    Bp = _round_up(B, TB)

    # --- activations: pad only if not already aligned --------------------------
    h_p = joint_h if (B, H) == (Bp, Hp) else \
        jnp.pad(joint_h, ((0, Bp - B), (0, Hp - H)))
    x_p = mgn_h_tilde if (B, D) == (Bp, Dp) else \
        jnp.pad(mgn_h_tilde, ((0, Bp - B), (0, Dp - D)))

    # --- observed indices as a lane-dense VMEM row (pad with -1 = no match) ----
    n_obs_p = _round_up(n_obs, 128)
    iobs_p = jnp.full((1, n_obs_p), -1, jnp.int32)
    iobs_p = iobs_p.at[0, :n_obs].set(i_obs.astype(jnp.int32))

    # --- VMEM budget (weights single-buffered, activation tiles double-buffered)
    vmem_est = 4 * (
        Dp * 2 * Hp + 2 * Hp + n_obs_p            # resident weights / bias / idx
        + 2 * (TB * Hp + TB * Dp + TB * Hp)       # double-buffered in/out tiles
        + 3 * TB * 2 * Hp                         # zh + gate temporaries headroom
    )
    vmem_limit = int(min(max(2 * vmem_est, 16 << 20), 64 << 20))

    grid = (Bp // TB,)
    out_padded = pl.pallas_call(
        _gru_obs_kernel,
        out_shape=jax.ShapeDtypeStruct((Bp, Hp), jnp.float32),
        grid=grid,
        in_specs=[
            pl.BlockSpec((TB, Hp), lambda i: (i, 0)),                  # joint_h tile
            pl.BlockSpec((TB, Dp), lambda i: (i, 0)),                  # mgn_h_tilde tile
            pl.BlockSpec(memory_space=pltpu.MemorySpace.VMEM),         # fused W (resident)
            pl.BlockSpec(memory_space=pltpu.MemorySpace.VMEM),         # fused b (resident)
            pl.BlockSpec(memory_space=pltpu.MemorySpace.VMEM),         # i_obs row (resident)
        ],
        out_specs=pl.BlockSpec((TB, Hp), lambda i: (i, 0)),
        compiler_params=pltpu.CompilerParams(
            dimension_semantics=("parallel",),       # megacore sharding on v7x
            vmem_limit_bytes=vmem_limit),
    )(h_p, x_p, w_fused, b_fused, iobs_p)

    if (B, H) == (Bp, Hp):
        return out_padded
    return out_padded[:B, :H]


def _xavier_uniform(key, shape):
    fan_in, fan_out = shape
    bound = float(np.sqrt(6.0 / (fan_in + fan_out)))
    return jax.random.uniform(key, shape, jnp.float32, -bound, bound)


if __name__ == "__main__":
    # Module hyper-params (small). torch.mm(mgn_h_tilde, W_h) in the original
    # module only type-checks when input_size * n_dim == joint_hidden_size.
    input_size = 8
    n_dim = 4
    joint_hidden_size = 32          # == input_size * n_dim
    B = 8                           # batch of hidden states

    key = jax.random.PRNGKey(0)
    k_h, k_x, k_wz, k_wh = jax.random.split(key, 4)

    joint_h = jax.random.normal(k_h, (B, joint_hidden_size), jnp.float32)
    mgn_h_tilde = jax.random.normal(k_x, (B, input_size * n_dim), jnp.float32)
    i_obs = jnp.array([0, 2, 5], dtype=jnp.int32)   # observed rows

    # deterministic parameter init matching joint_GRUCell.reset_parameters
    W_z = _xavier_uniform(k_wz, (input_size * n_dim, joint_hidden_size))
    W_h = _xavier_uniform(k_wh, (joint_hidden_size, joint_hidden_size))
    b_z = jnp.zeros((joint_hidden_size,), jnp.float32)
    b_h = jnp.zeros((joint_hidden_size,), jnp.float32)

    # pack once (hoisted out of the per-step hot path)
    w_fused, b_fused = pack_joint_gru_params(W_z, W_h, b_z, b_h)

    out = joint_gru_ode_obs_cell(joint_h, mgn_h_tilde, i_obs, w_fused, b_fused)
    out = jax.block_until_ready(out)

    # pure-JAX reference check (same semantics as the PyTorch module)
    x_o = mgn_h_tilde[i_obs]
    h_o = joint_h[i_obs]
    z = jax.nn.sigmoid(x_o @ W_z + b_z)
    h_t = jnp.tanh(x_o @ W_h + b_h)
    ref = joint_h.at[i_obs].set(h_t + z * (h_o - h_t))
    np.testing.assert_allclose(np.asarray(out), np.asarray(ref), rtol=1e-5, atol=1e-5)

    print("KERNEL_OK")
</pallas_src>

<mosaic_0001>
module attributes {stable_mosaic.version = 11 : i64} {
  func.func @_gru_obs_kernel(%arg0: i32, %arg1: memref<8x128xf32, #tpu.memory_space<vmem>>, %arg2: memref<8x128xf32, #tpu.memory_space<vmem>>, %arg3: memref<128x256xf32, #tpu.memory_space<vmem>>, %arg4: memref<1x256xf32, #tpu.memory_space<vmem>>, %arg5: memref<1x128xi32, #tpu.memory_space<vmem>>, %arg6: memref<8x128xf32, #tpu.memory_space<vmem>>) attributes {dimension_semantics = [#tpu.dimension_semantics<parallel>], iteration_bounds = array<i64: 1>, scalar_prefetch = 0 : i64, scratch_operands = 0 : i64, tpu.core_type = #tpu.core_type<tc>, window_params = [{transform_indices = @transform_0, window_bounds = array<i64: 8, 128>}, {transform_indices = @transform_1, window_bounds = array<i64: 8, 128>}, {pipeline_mode = #tpu.pipeline_mode<synchronous>, transform_indices = @transform_2, window_bounds = array<i64: 128, 256>}, {pipeline_mode = #tpu.pipeline_mode<synchronous>, transform_indices = @transform_3, window_bounds = array<i64: 1, 256>}, {pipeline_mode = #tpu.pipeline_mode<synchronous>, transform_indices = @transform_4, window_bounds = array<i64: 1, 128>}, {transform_indices = @transform_5, window_bounds = array<i64: 8, 128>}]} {
    %c0 = arith.constant 0 : index
    %c0_0 = arith.constant 0 : index
    %0 = vector.load %arg1[%c0, %c0_0] : memref<8x128xf32, #tpu.memory_space<vmem>>, vector<8x128xf32>
    %c0_1 = arith.constant 0 : index
    %c0_2 = arith.constant 0 : index
    %1 = vector.load %arg2[%c0_1, %c0_2] : memref<8x128xf32, #tpu.memory_space<vmem>>, vector<8x128xf32>
    %c0_3 = arith.constant 0 : index
    %c0_4 = arith.constant 0 : index
    %2 = vector.load %arg3[%c0_3, %c0_4] : memref<128x256xf32, #tpu.memory_space<vmem>>, vector<128x256xf32>
    %cst = arith.constant dense<0.000000e+00> : vector<8x256xf32>
    %3 = tpu.matmul %1, %2, %cst {dimension_numbers = #tpu.dot_dimension_numbers<[1], [0], [0], [1], [0, 0, 1, 1], [], []>} : vector<8x128xf32>, vector<128x256xf32>, vector<8x256xf32> -> vector<8x256xf32>
    %c0_5 = arith.constant 0 : index
    %c0_6 = arith.constant 0 : index
    %4 = vector.load %arg4[%c0_5, %c0_6] : memref<1x256xf32, #tpu.memory_space<vmem>>, vector<1x256xf32>
    %5 = vector.broadcast %4 : vector<1x256xf32> to vector<8x256xf32>
    %6 = arith.addf %3, %5 : vector<8x256xf32>
    %7 = vector.extract_strided_slice %6 {offsets = [0, 0], sizes = [8, 128], strides = [1, 1]} : vector<8x256xf32> to vector<8x128xf32>
    %8 = arith.negf %7 : vector<8x128xf32>
    %9 = math.exp %8 : vector<8x128xf32>
    %cst_7 = arith.constant 1.000000e+00 : f32
    %10 = vector.broadcast %cst_7 : f32 to vector<8x128xf32>
    %11 = arith.addf %10, %9 : vector<8x128xf32>
    %12 = arith.divf %10, %11 : vector<8x128xf32>
    %13 = vector.extract_strided_slice %6 {offsets = [0, 128], sizes = [8, 128], strides = [1, 1]} : vector<8x256xf32> to vector<8x128xf32>
    %14 = math.tanh %13 : vector<8x128xf32>
    %15 = arith.subf %0, %14 : vector<8x128xf32>
    %16 = arith.mulf %12, %15 : vector<8x128xf32>
    %17 = arith.addf %14, %16 : vector<8x128xf32>
    %c8_i32 = arith.constant 8 : i32
    %18 = arith.muli %arg0, %c8_i32 : i32
    %19 = tpu.iota {dimensions = array<i32: 0>} : vector<8x128xi32>
    %20 = vector.broadcast %18 : i32 to vector<8x128xi32>
    %21 = arith.addi %19, %20 : vector<8x128xi32>
    %c0_8 = arith.constant 0 : index
    %c0_9 = arith.constant 0 : index
    %22 = vector.load %arg5[%c0_8, %c0_9] : memref<1x128xi32, #tpu.memory_space<vmem>>, vector<1x128xi32>
    %23 = vector.broadcast %22 : vector<1x128xi32> to vector<8x128xi32>
    %24 = arith.cmpi eq, %21, %23 : vector<8x128xi32>
    %25 = arith.extui %24 : vector<8x128xi1> to vector<8x128xi32>
    %26 = arith.sitofp %25 : vector<8x128xi32> to vector<8x128xf32>
    %cst_10 = arith.constant dense<0xFF800000> : vector<8xf32>
    %27 = vector.multi_reduction <maximumf>, %26, %cst_10 [1] : vector<8x128xf32> to vector<8xf32>
    %28 = vector.shape_cast %27 : vector<8xf32> to vector<8x1xf32>
    %cst_11 = arith.constant 0.000000e+00 : f32
    %29 = vector.broadcast %cst_11 : f32 to vector<8x1xf32>
    %30 = arith.cmpf ogt, %28, %29 : vector<8x1xf32>
    %31 = vector.shape_cast %30 : vector<8x1xi1> to vector<8x1xi1>
    %32 = vector.broadcast %31 : vector<8x1xi1> to vector<8x128xi1>
    %33 = arith.select %32, %17, %0 : vector<8x128xi1>, vector<8x128xf32>
    %c0_12 = arith.constant 0 : index
    %c0_13 = arith.constant 0 : index
    %34 = vector.load %arg6[%c0_12, %c0_13] : memref<8x128xf32, #tpu.memory_space<vmem>>, vector<8x128xf32>
    tpu.vector_store %arg6[%c0_12, %c0_13], %33 {strides = array<i32>} : memref<8x128xf32, #tpu.memory_space<vmem>>, vector<8x128xf32>,
    return
  }
  func.func @transform_0(%arg0: i32) -> (i32, i32) {
    %c0_i32 = arith.constant 0 : i32
    %c0_i32_0 = arith.constant 0 : i32
    return %arg0, %c0_i32 : i32, i32
  }
  func.func @transform_1(%arg0: i32) -> (i32, i32) {
    %c0_i32 = arith.constant 0 : i32
    %c0_i32_0 = arith.constant 0 : i32
    return %arg0, %c0_i32 : i32, i32
  }
  func.func @transform_2(%arg0: i32) -> (i32, i32) {
    %c0_i32 = arith.constant 0 : i32
    %c0_i32_0 = arith.constant 0 : i32
    %c0_i32_1 = arith.constant 0 : i32
    return %c0_i32, %c0_i32_0 : i32, i32
  }
  func.func @transform_3(%arg0: i32) -> (i32, i32) {
    %c0_i32 = arith.constant 0 : i32
    %c0_i32_0 = arith.constant 0 : i32
    %c0_i32_1 = arith.constant 0 : i32
    return %c0_i32, %c0_i32_0 : i32, i32
  }
  func.func @transform_4(%arg0: i32) -> (i32, i32) {
    %c0_i32 = arith.constant 0 : i32
    %c0_i32_0 = arith.constant 0 : i32
    %c0_i32_1 = arith.constant 0 : i32
    return %c0_i32, %c0_i32_0 : i32, i32
  }
  func.func @transform_5(%arg0: i32) -> (i32, i32) {
    %c0_i32 = arith.constant 0 : i32
    %c0_i32_0 = arith.constant 0 : i32
    return %arg0, %c0_i32 : i32, i32
  }
}

</mosaic_0001>

<llo_original>
// kernel: tpu_custom_call.1
$region0: #{tpu_custom_call.1}
  #allocation0 [shape = 'u32[]', space=smem, size = 0x4, offset = 0x4, fixed_abs, tag = 'smem constant byte address 0x4 - core index']
  #allocation1 [shape = 'u32[72,128]{1,0:T(1,128)}', space=vmem, size = 0x9000, scoped, tag = 'internal scratch']
  %s0 = inlined_call_operand.hbm [shape: f32[8,128], index: 0, kind: input, shape index: {}]
  %s1 = inlined_call_operand.hbm [shape: f32[8,128], index: 1, kind: input, shape index: {}]
  %s2 = inlined_call_operand.hbm [shape: f32[128,256], index: 2, kind: input, shape index: {}]
  %s3 = inlined_call_operand.vmem [shape: f32[1,256], index: 3, kind: input, shape index: {}]
  %s4 = inlined_call_operand.vmem [shape: s32[1,128], index: 4, kind: input, shape index: {}]
  %s5 = inlined_call_operand.hbm [shape: f32[8,128], index: 5, kind: output, shape index: {}]
  %s6 = sld [smem:[#allocation0]]
  $region42: #{tpu_custom_call.1} parent=0
    _
  %s8 = ssub.s32 1, %s6
  %s9 = scalar_select 0, %s8, %s6
  $region1: #{tpu_custom_call.1} parent=0
    #allocation2 [shape = 'u8[4096]{0}', space=vmem, size = 0x1000, scoped, tag = 'input window, operand 0, single buffered']
    #allocation3 [shape = 's32[1]{0}', space=sflag, size = 0x4, scoped, tag = 'scoped memory for tpu_custom_call.1']
    #allocation4 [shape = 's32[1]{0}', space=sflag, size = 0x4, scoped, tag = 'scoped memory for tpu_custom_call.1']
    #allocation5 [shape = 'u8[4096]{0}', space=vmem, size = 0x1000, scoped, tag = 'input window, operand 1, single buffered']
    #allocation6 [shape = 's32[1]{0}', space=sflag, size = 0x4, scoped, tag = 'scoped memory for tpu_custom_call.1']
    #allocation7 [shape = 'u8[131072]{0}', space=vmem, size = 0x20000, scoped, tag = 'input window, operand 2, single buffered']
    #allocation8 [shape = 'u8[4096]{0}', space=vmem, size = 0x1000, scoped, tag = 'output window, operand 0, single buffered']
    %10 = vsyncpa [#allocation3], 0
    %11 = vsyncpa [#allocation6], 0
    %12 = vsyncpa [#allocation4], 0
    // Predicated region
    $region2: #{tpu_custom_call.1} parent=1 // pred_check
      _
    $region3: #{tpu_custom_call.1} parent=1 // pred_check_branch
      %14 = sbr.rel (0) target = $region5
    $region4: #{tpu_custom_call.1} parent=1 // pred_region
      %16 = vsyncadd [#allocation3], 0
      %s18 = sshll.u32 %s0, 4
      %s19 = int_to_ptr.hbm [resolvable:$true] %s18
      %s20 = sshll.u32 [#allocation2], 4
      %s21 = int_to_ptr.vmem [resolvable:$true] %s20
      %23 = dma.hbm_to_vmem [thread:$0]  %s19, 128, %s21, [#allocation3]
    $region5: #{tpu_custom_call.1} parent=1 // pred_fallthru
      _
    // Predicated region
    $region6: #{tpu_custom_call.1} parent=1 // pred_check
      _
    $region7: #{tpu_custom_call.1} parent=1 // pred_check_branch
      %25 = sbr.rel (0) target = $region9
    $region8: #{tpu_custom_call.1} parent=1 // pred_region
      %27 = vsyncadd [#allocation6], 0
      %s29 = sshll.u32 %s1, 4
      %s30 = int_to_ptr.hbm [resolvable:$true] %s29
      %s31 = sshll.u32 [#allocation5], 4
      %s32 = int_to_ptr.vmem [resolvable:$true] %s31
      %34 = dma.hbm_to_vmem [thread:$0]  %s30, 128, %s32, [#allocation6]
    $region9: #{tpu_custom_call.1} parent=1 // pred_fallthru
      _
    // Predicated region
    $region10: #{tpu_custom_call.1} parent=1 // pred_check
      _
    $region11: #{tpu_custom_call.1} parent=1 // pred_check_branch
      %36 = sbr.rel (0) target = $region13
    $region12: #{tpu_custom_call.1} parent=1 // pred_region
      %38 = vsyncadd [#allocation6], 0
      %s39 = sshll.u32 %s2, 4
      %s40 = int_to_ptr.hbm [resolvable:$true] %s39
      %s41 = sshll.u32 [#allocation7], 4
      %s42 = int_to_ptr.vmem [resolvable:$true] %s41
      %47 = dma.hbm_to_vmem [thread:$0]  %s40, 4096, %s42, [#allocation6], 256, 256, 16
    $region13: #{tpu_custom_call.1} parent=1 // pred_fallthru
      _
    // Predicated region
    $region14: #{tpu_custom_call.1} parent=1 // pred_check
      _
    $region15: #{tpu_custom_call.1} parent=1 // pred_check_branch
      %49 = sbr.rel (0) target = $region17
    $region16: #{tpu_custom_call.1} parent=1 // pred_region
      _
    $region17: #{tpu_custom_call.1} parent=1 // pred_fallthru
      _
    // Predicated region
    $region18: #{tpu_custom_call.1} parent=1 // pred_check
      _
    $region19: #{tpu_custom_call.1} parent=1 // pred_check_branch
      %51 = sbr.rel (0) target = $region21
    $region20: #{tpu_custom_call.1} parent=1 // pred_region
      _
    $region21: #{tpu_custom_call.1} parent=1 // pred_fallthru
      _
    // Predicated region
    $region22: #{tpu_custom_call.1} parent=1 // pred_check
      _
    $region23: #{tpu_custom_call.1} parent=1 // pred_check_branch
      %53 = sbr.rel (0) target = $region25
    $region24: #{tpu_custom_call.1} parent=1 // pred_region
      %55 = dma.done [#allocation3], 128
    $region25: #{tpu_custom_call.1} parent=1 // pred_fallthru
      _
    // Predicated region
    $region26: #{tpu_custom_call.1} parent=1 // pred_check
      _
    $region27: #{tpu_custom_call.1} parent=1 // pred_check_branch
      %57 = sbr.rel (0) target = $region29
    $region28: #{tpu_custom_call.1} parent=1 // pred_region
      %59 = dma.done [#allocation6], 128
    $region29: #{tpu_custom_call.1} parent=1 // pred_fallthru
      _
    // Predicated region
    $region30: #{tpu_custom_call.1} parent=1 // pred_check
      _
    $region31: #{tpu_custom_call.1} parent=1 // pred_check_branch
      %61 = sbr.rel (0) target = $region33
    $region32: #{tpu_custom_call.1} parent=1 // pred_region
      %63 = dma.done [#allocation6], 4096
    $region33: #{tpu_custom_call.1} parent=1 // pred_fallthru
      _
    %v64 = vld [vmem:[#allocation2] sm:$0xff]
    %v65 = vld [vmem:[#allocation5] sm:$0xff]
    %v66 = vld [vmem:[#allocation7] sm:$0xff]
    %v67 = vld [vmem:[#allocation7 + $0x8] sm:$0xff]
    %v68 = vld [vmem:[#allocation7 + $0x10] sm:$0xff]
    %v69 = vld [vmem:[#allocation7 + $0x18] sm:$0xff]
    %v70 = vld [vmem:[#allocation7 + $0x20] sm:$0xff]
    %v71 = vld [vmem:[#allocation7 + $0x28] sm:$0xff]
    %v72 = vld [vmem:[#allocation7 + $0x30] sm:$0xff]
    %v73 = vld [vmem:[#allocation7 + $0x38] sm:$0xff]
    %v74 = vld [vmem:[#allocation7 + $0x40] sm:$0xff]
    %v75 = vld [vmem:[#allocation7 + $0x48] sm:$0xff]
    %v76 = vld [vmem:[#allocation7 + $0x50] sm:$0xff]
    %v77 = vld [vmem:[#allocation7 + $0x58] sm:$0xff]
    %v78 = vld [vmem:[#allocation7 + $0x60] sm:$0xff]
    %v79 = vld [vmem:[#allocation7 + $0x68] sm:$0xff]
    %v80 = vld [vmem:[#allocation7 + $0x70] sm:$0xff]
    %v81 = vld [vmem:[#allocation7 + $0x78] sm:$0xff]
    %v82 = vld [vmem:[#allocation7 + $0x80] sm:$0xff]
    %v83 = vld [vmem:[#allocation7 + $0x88] sm:$0xff]
    %v84 = vld [vmem:[#allocation7 + $0x90] sm:$0xff]
    %v85 = vld [vmem:[#allocation7 + $0x98] sm:$0xff]
    %v86 = vld [vmem:[#allocation7 + $0xa0] sm:$0xff]
    %v87 = vld [vmem:[#allocation7 + $0xa8] sm:$0xff]
    %v88 = vld [vmem:[#allocation7 + $0xb0] sm:$0xff]
    %v89 = vld [vmem:[#allocation7 + $0xb8] sm:$0xff]
    %v90 = vld [vmem:[#allocation7 + $0xc0] sm:$0xff]
    %v91 = vld [vmem:[#allocation7 + $0xc8] sm:$0xff]
    %v92 = vld [vmem:[#allocation7 + $0xd0] sm:$0xff]
    %v93 = vld [vmem:[#allocation7 + $0xd8] sm:$0xff]
    %v94 = vld [vmem:[#allocation7 + $0xe0] sm:$0xff]
    %v95 = vld [vmem:[#allocation7 + $0xe8] sm:$0xff]
    %v96 = vld [vmem:[#allocation7 + $0xf0] sm:$0xff]
    %v97 = vld [vmem:[#allocation7 + $0xf8] sm:$0xff]
    %v98 = vld [vmem:[%s3] sm:$0x3]
    %v100 = vperm.slane %v98, 0
    %v101 = vperm.slane %v98, 1
    %104 = vmatpush.msra.mxu0 %v96
    %105 = vmatpush.msra.mxu0 %v94
    %106 = vmatpush.msra.mxu0 %v92
    %107 = vmatpush.msra.mxu0 %v90
    %108 = vmatpush.msra.mxu0 %v88
    %109 = vmatpush.msra.mxu0 %v86
    %110 = vmatpush.msra.mxu0 %v84
    %111 = vmatpush.msra.mxu0 %v82
    %112 = vmatpush.msra.mxu0 %v80
    %113 = vmatpush.msra.mxu0 %v78
    %114 = vmatpush.msra.mxu0 %v76
    %115 = vmatpush.msra.mxu0 %v74
    %116 = vmatpush.msra.mxu0 %v72
    %117 = vmatpush.msra.mxu0 %v70
    %118 = vmatpush.msra.mxu0 %v68
    %119 = vmatpush.msra.mxu0 %v66
    %120 = vmatmul.f32.gmra.mxu0 %v65
    %v121 = vpop.f32.mrf.mxu0
    %v122 = vadd.f32 %v100, %v121
    %123 = vdwg.mxu0
    %124 = vmatpush.msra.mxu0 %v97
    %125 = vmatpush.msra.mxu0 %v95
    %126 = vmatpush.msra.mxu0 %v93
    %127 = vmatpush.msra.mxu0 %v91
    %128 = vmatpush.msra.mxu0 %v89
    %129 = vmatpush.msra.mxu0 %v87
    %130 = vmatpush.msra.mxu0 %v85
    %131 = vmatpush.msra.mxu0 %v83
    %132 = vmatpush.msra.mxu0 %v81
    %133 = vmatpush.msra.mxu0 %v79
    %134 = vmatpush.msra.mxu0 %v77
    %135 = vmatpush.msra.mxu0 %v75
    %136 = vmatpush.msra.mxu0 %v73
    %137 = vmatpush.msra.mxu0 %v71
    %138 = vmatpush.msra.mxu0 %v69
    %139 = vmatpush.msra.mxu0 %v67
    %140 = vmatmul.f32.gmra.mxu0 %v65
    %v141 = vpop.f32.mrf.mxu0
    %v142 = vadd.f32 %v101, %v141
    %143 = vdwg.mxu0
    %v144 = vxor.u32 %v122, 2147483648
    %v145 = vmul.f32 %v144, 1.442695
    %v146 = vpow.pop %v145
    %v147 = vadd.f32 %v146, 1.0
    %v148 = vrcp.pop %v147
    %v149 = vmul.f32 %v147, %v148
    %v150 = vsub.f32 1.0, %v149
    %v151 = vmul.f32 %v148, %v150
    %v152 = vadd.f32 %v148, %v151
    %vm153 = vweird.f32 %v147
    %vm154 = vweird.f32 %v148
    %vm155 = vmor %vm153, %vm154
    %v156 = vsel %vm155, %v148, %v152
    %v157 = vand.u32 2147483647, %v147
    %vm158 = vcmp.eq.f32.partialorder %v157, 8.507059e+37
    %v159 = vand.u32 %v147, 2147483648
    %v160 = vor.u32 1.1754944e-38, %v159
    %v161 = vsel %vm158, %v160, %v156
    %v162 = vmul.f32 1.0, %v161
    %v163 = vtanh.pop %v142
    %v164 = vsub.f32 %v64, %v163
    %v165 = vmul.f32 %v162, %v164
    %v166 = vadd.f32 %v163, %v165
    %s167 = smul.u32 0, 8
    %v168 = vlaneseq
    %v169 = vshrl.u32 %v168, 7
    %v170 = vstv %s167
    %v171 = vadd.s32 %v169, %v170
    %v172 = vld [vmem:[%s4] sm:$0x1]
    %v173 = vperm.slane %v172, 0
    %vm174 = vcmp.eq.s32.totalorder %v171, %v173
    %v175 = vsel %vm174, 1, 0
    %v176 = vcvt.s32.f32 %v175
    %177 = vmax.xlane.f32.xlu0 %v176
    %v178 = vpop.xlane.xlu0 %177
    %vm179 = vcmp.gt.f32.partialorder %v178, 0.0
    %v180 = vsel %vm179, 1, 0
    %vm181 = vcmp.eq.s32.totalorder %v180, 1
    %v182 = vsel %vm181, %v166, %v64
    %183 = vst [vmem:[#allocation8] sm:$0xff] %v182
    // Predicated region
    $region34: #{tpu_custom_call.1} parent=1 // pred_check
      _
    $region35: #{tpu_custom_call.1} parent=1 // pred_check_branch
      %185 = sbr.rel (0) target = $region37
    $region36: #{tpu_custom_call.1} parent=1 // pred_region
      %187 = vsyncadd [#allocation4], 0
      %s189 = sshll.u32 [#allocation8], 4
      %s190 = int_to_ptr.vmem [resolvable:$true] %s189
      %s191 = sshll.u32 %s5, 4
      %s192 = int_to_ptr.hbm [resolvable:$true] %s191
      %194 = dma.vmem_to_hbm [thread:$0]  %s190, 128, %s192, [#allocation4]
    $region37: #{tpu_custom_call.1} parent=1 // pred_fallthru
      _
    // Predicated region
    $region38: #{tpu_custom_call.1} parent=1 // pred_check
      _
    $region39: #{tpu_custom_call.1} parent=1 // pred_check_branch
      %196 = sbr.rel (0) target = $region41
    $region40: #{tpu_custom_call.1} parent=1 // pred_region
      %198 = dma.done [#allocation4], 128
    $region41: #{tpu_custom_call.1} parent=1 // pred_fallthru
      _
    %199 = vsyncpa [#allocation3], 1
    %200 = vsyncpa [#allocation6], 1
    %201 = vsyncpa [#allocation4], 1

</llo_original>
